<compile_context>
chip_gen: v6e
topology: v6e:2x2x1
jax: 0.10.0
libtpu: 0.0.40
codegen_flags: <defaults>
</compile_context>

<pallas_src>
import math
from functools import partial

import jax
import jax.numpy as jnp
from jax.experimental import pallas as pl
from jax.experimental.pallas import tpu as pltpu


def time_embedding_kernel(t_ref, w1_ref, b1_ref, w2_ref, b2_ref, out_ref,
                          *, half_dim, log_scale):
    """
    t_ref:   [TB, 1]              f32 timesteps (row tile)
    w1_ref:  [emb_dim1, emb_dim2] f32 (transpose of torch nn.Linear.weight)
    b1_ref:  [1, emb_dim2]        f32
    w2_ref:  [emb_dim2, emb_dim2] f32
    b2_ref:  [1, emb_dim2]        f32
    out_ref: [TB, emb_dim2]       f32
    """
    emb_dim1 = 2 * half_dim
    t = t_ref[...]                                              # [TB, 1]

    # Doubled frequency table built in-kernel (static config -> no DMA):
    # lane k in [0, half) and lane half+k both carry f_k = exp(-log_scale * k).
    lane = jax.lax.broadcasted_iota(jnp.int32, (1, emb_dim1), 1)
    k = jnp.where(lane < half_dim, lane, lane - half_dim).astype(jnp.float32)
    freqs = jnp.exp(k * (-log_scale))                           # [1, emb_dim1]

    # Sinusoidal embedding without a lane-axis concat: phase is identical in both
    # halves; select sin for the first half of lanes, cos for the second half.
    phase = t * freqs                                           # [TB, emb_dim1]
    lane_full = jax.lax.broadcasted_iota(jnp.int32, phase.shape, 1)
    emb = jnp.where(lane_full < half_dim, jnp.sin(phase), jnp.cos(phase))

    # Linear 1 + SiLU (f32 MXU accumulate, EUP logistic)
    h = jnp.dot(emb, w1_ref[...], preferred_element_type=jnp.float32) + b1_ref[...]
    h = h * jax.nn.sigmoid(h)

    # Linear 2
    out = jnp.dot(h, w2_ref[...], preferred_element_type=jnp.float32) + b2_ref[...]
    out_ref[...] = out.astype(out_ref.dtype)


def time_embedding(t, w1, b1, w2, b2, *, max_positions=10000):
    """t: [B] timesteps; w1: [emb_dim1, emb_dim2], w2: [emb_dim2, emb_dim2] (x @ W layout)."""
    B = t.shape[0]
    emb_dim1, emb_dim2 = w1.shape
    half_dim = emb_dim1 // 2
    log_scale = math.log(max_positions) / (half_dim - 1)

    t2d = t.astype(jnp.float32).reshape(B, 1)
    w1_f = w1.astype(jnp.float32)
    w2_f = w2.astype(jnp.float32)
    b1_2d = b1.astype(jnp.float32).reshape(1, emb_dim2)
    b2_2d = b2.astype(jnp.float32).reshape(1, emb_dim2)

    # Row tile: multiple of 8, single step for typical batches, capped so
    # double-buffered activations stay tiny vs VMEM on all generations.
    TB = min(512, 8 * pl.cdiv(B, 8))
    B_pad = TB * pl.cdiv(B, TB)
    if B_pad != B:
        t2d = jnp.pad(t2d, ((0, B_pad - B), (0, 0)))
    grid = (B_pad // TB,)

    cost = pl.CostEstimate(
        flops=2 * B_pad * (emb_dim1 * emb_dim2 + emb_dim2 * emb_dim2),
        transcendentals=B_pad * (emb_dim1 + emb_dim2),
        bytes_accessed=4 * (w1_f.size + w2_f.size + b1_2d.size + b2_2d.size
                            + B_pad * (1 + emb_dim2)),
    )

    kernel = partial(time_embedding_kernel, half_dim=half_dim, log_scale=log_scale)

    out = pl.pallas_call(
        kernel,
        out_shape=jax.ShapeDtypeStruct((B_pad, emb_dim2), jnp.float32),
        grid_spec=pltpu.PrefetchScalarGridSpec(
            num_scalar_prefetch=0,
            grid=grid,
            in_specs=[
                pl.BlockSpec((TB, 1), lambda i: (i, 0)),             # row tile of t
                pl.BlockSpec((emb_dim1, emb_dim2), lambda i: (0, 0)),  # resident weights
                pl.BlockSpec((1, emb_dim2), lambda i: (0, 0)),
                pl.BlockSpec((emb_dim2, emb_dim2), lambda i: (0, 0)),
                pl.BlockSpec((1, emb_dim2), lambda i: (0, 0)),
            ],
            out_specs=pl.BlockSpec((TB, emb_dim2), lambda i: (i, 0)),
        ),
        compiler_params=pltpu.CompilerParams(
            dimension_semantics=("parallel",)),                      # rows shard on v7x's 2 TCs
        cost_estimate=cost,
    )(t2d, w1_f, b1_2d, w2_f, b2_2d)
    return out[:B]


def xavier_uniform(key, fan_in, fan_out):
    # Matches torch.nn.init.xavier_uniform_ distribution; returns [fan_in, fan_out]
    # (transpose of torch's nn.Linear.weight layout, ready for x @ W).
    bound = math.sqrt(6.0 / (fan_in + fan_out))
    return jax.random.uniform(key, (fan_in, fan_out), jnp.float32, -bound, bound)


if __name__ == "__main__":
    # Config consistent with the module: emb_dim1, emb_dim2, max_positions
    emb_dim1 = 32
    emb_dim2 = 128
    max_positions = 10000
    B = 8

    key = jax.random.PRNGKey(0)
    k_t, k_w1, k_w2 = jax.random.split(key, 3)

    # Deterministic parameter init (xavier uniform weights, zero biases)
    w1 = xavier_uniform(k_w1, emb_dim1, emb_dim2)
    b1 = jnp.zeros((emb_dim2,), jnp.float32)
    w2 = xavier_uniform(k_w2, emb_dim2, emb_dim2)
    b2 = jnp.zeros((emb_dim2,), jnp.float32)

    # Example timesteps
    t = jax.random.randint(k_t, (B,), 0, max_positions).astype(jnp.float32)

    out = jax.block_until_ready(
        time_embedding(t, w1, b1, w2, b2, max_positions=max_positions))

    # Pure-JAX f32 reference mirroring the torch module's forward
    half_dim = emb_dim1 // 2
    scale = math.log(max_positions) / (half_dim - 1)
    freqs = jnp.exp(jnp.arange(half_dim, dtype=jnp.float32) * -scale)
    ph = t[:, None] * freqs[None, :]
    emb = jnp.concatenate([jnp.sin(ph), jnp.cos(ph)], axis=1)
    h = jnp.dot(emb, w1, preferred_element_type=jnp.float32) + b1
    h = h * jax.nn.sigmoid(h)
    ref = jnp.dot(h, w2, preferred_element_type=jnp.float32) + b2

    assert out.shape == (B, emb_dim2)
    assert jnp.allclose(out, ref, atol=2e-2, rtol=2e-2), "mismatch vs reference"

    print("KERNEL_OK")
</pallas_src>

<mosaic_0001>
module attributes {stable_mosaic.version = 11 : i64} {
  func.func @time_embedding_kernel(%arg0: i32, %arg1: memref<8x1xf32, #tpu.memory_space<vmem>>, %arg2: memref<32x128xf32, #tpu.memory_space<vmem>>, %arg3: memref<1x128xf32, #tpu.memory_space<vmem>>, %arg4: memref<128x128xf32, #tpu.memory_space<vmem>>, %arg5: memref<1x128xf32, #tpu.memory_space<vmem>>, %arg6: memref<8x128xf32, #tpu.memory_space<vmem>>) attributes {dimension_semantics = [#tpu.dimension_semantics<parallel>], iteration_bounds = array<i64: 1>, scalar_prefetch = 0 : i64, scratch_operands = 0 : i64, tpu.core_type = #tpu.core_type<tc>, window_params = [{transform_indices = @transform_0, window_bounds = array<i64: 8, 1>}, {pipeline_mode = #tpu.pipeline_mode<synchronous>, transform_indices = @transform_1, window_bounds = array<i64: 32, 128>}, {pipeline_mode = #tpu.pipeline_mode<synchronous>, transform_indices = @transform_2, window_bounds = array<i64: 1, 128>}, {pipeline_mode = #tpu.pipeline_mode<synchronous>, transform_indices = @transform_3, window_bounds = array<i64: 128, 128>}, {pipeline_mode = #tpu.pipeline_mode<synchronous>, transform_indices = @transform_4, window_bounds = array<i64: 1, 128>}, {transform_indices = @transform_5, window_bounds = array<i64: 8, 128>}]} {
    %c0 = arith.constant 0 : index
    %c0_0 = arith.constant 0 : index
    %0 = vector.load %arg1[%c0, %c0_0] : memref<8x1xf32, #tpu.memory_space<vmem>>, vector<8x1xf32>
    %1 = tpu.iota {dimensions = array<i32: 1>} : vector<1x32xi32>
    %c16_i32 = arith.constant 16 : i32
    %2 = vector.broadcast %c16_i32 : i32 to vector<1x32xi32>
    %3 = arith.cmpi slt, %1, %2 : vector<1x32xi32>
    %c16_i32_1 = arith.constant 16 : i32
    %4 = vector.broadcast %c16_i32_1 : i32 to vector<1x32xi32>
    %5 = arith.subi %1, %4 : vector<1x32xi32>
    %6 = arith.select %3, %1, %5 : vector<1x32xi1>, vector<1x32xi32>
    %7 = arith.sitofp %6 : vector<1x32xi32> to vector<1x32xf32>
    %cst = arith.constant -0.614022672 : f32
    %8 = vector.broadcast %cst : f32 to vector<1x32xf32>
    %9 = arith.mulf %7, %8 : vector<1x32xf32>
    %10 = math.exp %9 : vector<1x32xf32>
    %11 = vector.broadcast %0 : vector<8x1xf32> to vector<8x32xf32>
    %12 = vector.broadcast %10 : vector<1x32xf32> to vector<8x32xf32>
    %13 = arith.mulf %11, %12 : vector<8x32xf32>
    %14 = tpu.iota {dimensions = array<i32: 1>} : vector<8x32xi32>
    %c16_i32_2 = arith.constant 16 : i32
    %15 = vector.broadcast %c16_i32_2 : i32 to vector<8x32xi32>
    %16 = arith.cmpi slt, %14, %15 : vector<8x32xi32>
    %17 = math.sin %13 : vector<8x32xf32>
    %18 = math.cos %13 : vector<8x32xf32>
    %19 = arith.select %16, %17, %18 : vector<8x32xi1>, vector<8x32xf32>
    %c0_3 = arith.constant 0 : index
    %c0_4 = arith.constant 0 : index
    %20 = vector.load %arg2[%c0_3, %c0_4] : memref<32x128xf32, #tpu.memory_space<vmem>>, vector<32x128xf32>
    %cst_5 = arith.constant dense<0.000000e+00> : vector<8x128xf32>
    %21 = tpu.matmul %19, %20, %cst_5 {dimension_numbers = #tpu.dot_dimension_numbers<[1], [0], [0], [1], [0, 0, 1, 1], [], []>} : vector<8x32xf32>, vector<32x128xf32>, vector<8x128xf32> -> vector<8x128xf32>
    %c0_6 = arith.constant 0 : index
    %c0_7 = arith.constant 0 : index
    %22 = vector.load %arg3[%c0_6, %c0_7] : memref<1x128xf32, #tpu.memory_space<vmem>>, vector<1x128xf32>
    %23 = vector.broadcast %22 : vector<1x128xf32> to vector<8x128xf32>
    %24 = arith.addf %21, %23 : vector<8x128xf32>
    %25 = arith.negf %24 : vector<8x128xf32>
    %26 = math.exp %25 : vector<8x128xf32>
    %cst_8 = arith.constant 1.000000e+00 : f32
    %27 = vector.broadcast %cst_8 : f32 to vector<8x128xf32>
    %28 = arith.addf %27, %26 : vector<8x128xf32>
    %29 = arith.divf %27, %28 : vector<8x128xf32>
    %30 = arith.mulf %24, %29 : vector<8x128xf32>
    %c0_9 = arith.constant 0 : index
    %c0_10 = arith.constant 0 : index
    %31 = vector.load %arg4[%c0_9, %c0_10] : memref<128x128xf32, #tpu.memory_space<vmem>>, vector<128x128xf32>
    %cst_11 = arith.constant dense<0.000000e+00> : vector<8x128xf32>
    %32 = tpu.matmul %30, %31, %cst_11 {dimension_numbers = #tpu.dot_dimension_numbers<[1], [0], [0], [1], [0, 0, 1, 1], [], []>} : vector<8x128xf32>, vector<128x128xf32>, vector<8x128xf32> -> vector<8x128xf32>
    %c0_12 = arith.constant 0 : index
    %c0_13 = arith.constant 0 : index
    %33 = vector.load %arg5[%c0_12, %c0_13] : memref<1x128xf32, #tpu.memory_space<vmem>>, vector<1x128xf32>
    %34 = vector.broadcast %33 : vector<1x128xf32> to vector<8x128xf32>
    %35 = arith.addf %32, %34 : vector<8x128xf32>
    %c0_14 = arith.constant 0 : index
    %c0_15 = arith.constant 0 : index
    %36 = vector.load %arg6[%c0_14, %c0_15] : memref<8x128xf32, #tpu.memory_space<vmem>>, vector<8x128xf32>
    tpu.vector_store %arg6[%c0_14, %c0_15], %35 {strides = array<i32>} : memref<8x128xf32, #tpu.memory_space<vmem>>, vector<8x128xf32>,
    return
  }
  func.func @transform_0(%arg0: i32) -> (i32, i32) {
    %c0_i32 = arith.constant 0 : i32
    %c0_i32_0 = arith.constant 0 : i32
    return %arg0, %c0_i32 : i32, i32
  }
  func.func @transform_1(%arg0: i32) -> (i32, i32) {
    %c0_i32 = arith.constant 0 : i32
    %c0_i32_0 = arith.constant 0 : i32
    %c0_i32_1 = arith.constant 0 : i32
    return %c0_i32, %c0_i32_0 : i32, i32
  }
  func.func @transform_2(%arg0: i32) -> (i32, i32) {
    %c0_i32 = arith.constant 0 : i32
    %c0_i32_0 = arith.constant 0 : i32
    %c0_i32_1 = arith.constant 0 : i32
    return %c0_i32, %c0_i32_0 : i32, i32
  }
  func.func @transform_3(%arg0: i32) -> (i32, i32) {
    %c0_i32 = arith.constant 0 : i32
    %c0_i32_0 = arith.constant 0 : i32
    %c0_i32_1 = arith.constant 0 : i32
    return %c0_i32, %c0_i32_0 : i32, i32
  }
  func.func @transform_4(%arg0: i32) -> (i32, i32) {
    %c0_i32 = arith.constant 0 : i32
    %c0_i32_0 = arith.constant 0 : i32
    %c0_i32_1 = arith.constant 0 : i32
    return %c0_i32, %c0_i32_0 : i32, i32
  }
  func.func @transform_5(%arg0: i32) -> (i32, i32) {
    %c0_i32 = arith.constant 0 : i32
    %c0_i32_0 = arith.constant 0 : i32
    return %arg0, %c0_i32 : i32, i32
  }
}

</mosaic_0001>

<llo_original>
// kernel: tpu_custom_call.1
$region0: #{tpu_custom_call.1}
  #allocation0 [shape = 'u32[]', space=smem, size = 0x4, offset = 0x4, fixed_abs, tag = 'smem constant byte address 0x4 - core index']
  #allocation1 [shape = 'u32[144,128]{1,0:T(1,128)}', space=vmem, size = 0x12000, scoped, tag = 'internal scratch']
  %s0 = inlined_call_operand.vmem [shape: f32[8,1], index: 0, kind: input, shape index: {}]
  %s1 = inlined_call_operand.hbm [shape: f32[32,128], index: 1, kind: input, shape index: {}]
  %s2 = inlined_call_operand.vmem [shape: f32[1,128], index: 2, kind: input, shape index: {}]
  %s3 = inlined_call_operand.hbm [shape: f32[128,128], index: 3, kind: input, shape index: {}]
  %s4 = inlined_call_operand.vmem [shape: f32[1,128], index: 4, kind: input, shape index: {}]
  %s5 = inlined_call_operand.hbm [shape: f32[8,128], index: 5, kind: output, shape index: {}]
  %s6 = sld [smem:[#allocation0]]
  $region38: #{tpu_custom_call.1} parent=0
    _
  %s8 = ssub.s32 1, %s6
  %s9 = scalar_select 0, %s8, %s6
  $region1: #{tpu_custom_call.1} parent=0
    #allocation2 [shape = 'u8[16384]{0}', space=vmem, size = 0x4000, scoped, tag = 'input window, operand 1, single buffered']
    #allocation3 [shape = 's32[1]{0}', space=sflag, size = 0x4, scoped, tag = 'scoped memory for tpu_custom_call.1']
    #allocation4 [shape = 's32[1]{0}', space=sflag, size = 0x4, scoped, tag = 'scoped memory for tpu_custom_call.1']
    #allocation5 [shape = 'u8[65536]{0}', space=vmem, size = 0x10000, scoped, tag = 'input window, operand 3, single buffered']
    #allocation6 [shape = 's32[1]{0}', space=sflag, size = 0x4, scoped, tag = 'scoped memory for tpu_custom_call.1']
    #allocation7 [shape = 'u8[4096]{0}', space=vmem, size = 0x1000, scoped, tag = 'output window, operand 0, single buffered']
    %10 = vsyncpa [#allocation3], 0
    %11 = vsyncpa [#allocation6], 0
    %12 = vsyncpa [#allocation4], 0
    // Predicated region
    $region2: #{tpu_custom_call.1} parent=1 // pred_check
      _
    $region3: #{tpu_custom_call.1} parent=1 // pred_check_branch
      %14 = sbr.rel (0) target = $region5
    $region4: #{tpu_custom_call.1} parent=1 // pred_region
      _
    $region5: #{tpu_custom_call.1} parent=1 // pred_fallthru
      _
    // Predicated region
    $region6: #{tpu_custom_call.1} parent=1 // pred_check
      _
    $region7: #{tpu_custom_call.1} parent=1 // pred_check_branch
      %16 = sbr.rel (0) target = $region9
    $region8: #{tpu_custom_call.1} parent=1 // pred_region
      %s18 = ssub.s32 512, 512
      %19 = vsyncadd [#allocation3], %s18
      %s20 = sshll.u32 [#allocation2], 4
      %s21 = int_to_ptr.vmem [resolvable:$true] %s20
      %26 = dma.hbm_to_vmem [thread:$0]  %s1, 512, %s21, [#allocation3], 128, 128, 8
    $region9: #{tpu_custom_call.1} parent=1 // pred_fallthru
      _
    // Predicated region
    $region10: #{tpu_custom_call.1} parent=1 // pred_check
      _
    $region11: #{tpu_custom_call.1} parent=1 // pred_check_branch
      %28 = sbr.rel (0) target = $region13
    $region12: #{tpu_custom_call.1} parent=1 // pred_region
      _
    $region13: #{tpu_custom_call.1} parent=1 // pred_fallthru
      _
    // Predicated region
    $region14: #{tpu_custom_call.1} parent=1 // pred_check
      _
    $region15: #{tpu_custom_call.1} parent=1 // pred_check_branch
      %30 = sbr.rel (0) target = $region17
    $region16: #{tpu_custom_call.1} parent=1 // pred_region
      %s32 = ssub.s32 2048, 2048
      %33 = vsyncadd [#allocation6], %s32
      %s34 = sshll.u32 [#allocation5], 4
      %s35 = int_to_ptr.vmem [resolvable:$true] %s34
      %40 = dma.hbm_to_vmem [thread:$0]  %s3, 2048, %s35, [#allocation6], 128, 128, 8
    $region17: #{tpu_custom_call.1} parent=1 // pred_fallthru
      _
    // Predicated region
    $region18: #{tpu_custom_call.1} parent=1 // pred_check
      _
    $region19: #{tpu_custom_call.1} parent=1 // pred_check_branch
      %42 = sbr.rel (0) target = $region21
    $region20: #{tpu_custom_call.1} parent=1 // pred_region
      _
    $region21: #{tpu_custom_call.1} parent=1 // pred_fallthru
      _
    // Predicated region
    $region22: #{tpu_custom_call.1} parent=1 // pred_check
      _
    $region23: #{tpu_custom_call.1} parent=1 // pred_check_branch
      %44 = sbr.rel (0) target = $region25
    $region24: #{tpu_custom_call.1} parent=1 // pred_region
      %45 = dma.done [#allocation3], 512
    $region25: #{tpu_custom_call.1} parent=1 // pred_fallthru
      _
    // Predicated region
    $region26: #{tpu_custom_call.1} parent=1 // pred_check
      _
    $region27: #{tpu_custom_call.1} parent=1 // pred_check_branch
      %47 = sbr.rel (0) target = $region29
    $region28: #{tpu_custom_call.1} parent=1 // pred_region
      %48 = dma.done [#allocation6], 2048
    $region29: #{tpu_custom_call.1} parent=1 // pred_fallthru
      _
    %v49 = vld [vmem:[%s0] sm:$0xff]
    %v50 = vlaneseq
    %v51 = vand.u32 %v50, 127
    %vm52 = vcmp.lt.s32.totalorder %v51, 16
    %v53 = vsub.s32 %v51, 16
    %v54 = vsel %vm52, %v51, %v53
    %v55 = vcvt.s32.f32 %v54
    %v56 = vmul.f32 %v55, -0.6140227
    %v57 = vmul.f32 %v56, 1.442695
    %v58 = vpow.pop %v57
    %60 = vset.pattern.permute.xlu0 0
    %61 = vperm.xlu0 %60, %v49
    %v62 = vpop.permute.xlu0 %61
    %v64 = vmul.f32 %v62, %v58
    %v65 = vand.u32 2147483647, %v64
    %vm66 = vcmp.le.f32.partialorder %v65, 0.7853982
    %vm67 = vcmp.lt.s32.totalorder %v64, 0
    %v68 = vand.u32 %v64, 2139095040
    %v69 = vshrl.u32 %v68, 23
    %v70 = vsub.s32 %v69, 127
    %v71 = vand.u32 2147483647, %v64
    %v72 = vand.u32 %v71, 8388607
    %v73 = vor.u32 %v72, 8388608
    %v74 = vsub.s32 0, %v73
    %v75 = vadd.s32 %v70, 1
    %vm76 = vcmp.gt.s32.totalorder %v75, 0
    %v77 = vsel %vm76, %v75, 0
    %v78 = vshrl.u32 %v77, 5
    %v79 = vand.u32 %v77, 31
    %v80 = vsub.s32 32, %v79
    %v81 = vshrl.u32 683565275, %v80
    %v82 = vshll.u32 683565275, %v79
    %v83 = vshrl.u32 2475754826, %v80
    %v84 = vor.u32 %v82, %v83
    %v85 = vshll.u32 2475754826, %v79
    %v86 = vshrl.u32 2131351028, %v80
    %v87 = vor.u32 %v85, %v86
    %v88 = vshll.u32 2131351028, %v79
    %v89 = vshrl.u32 2102212464, %v80
    %v90 = vor.u32 %v88, %v89
    %v91 = vshll.u32 2102212464, %v79
    %v92 = vshrl.u32 920167782, %v80
    %v93 = vor.u32 %v91, %v92
    %v94 = vshll.u32 920167782, %v79
    %v95 = vshrl.u32 1326507024, %v80
    %v96 = vor.u32 %v94, %v95
    %vm97 = vcmp.lt.s32.totalorder %v78, 1
    %vm98 = vcmp.lt.s32.totalorder %v78, 2
    %vm99 = vcmp.lt.s32.totalorder %v78, 3
    %vm100 = vcmp.lt.s32.totalorder %v78, 4
    %v101 = vsel %vm97, %v81, %v84
    %v102 = vsel %vm100, %v90, 2102212464
    %v103 = vsel %vm99, %v87, %v102
    %v104 = vsel %vm98, %v101, %v103
    %v105 = vsel %vm97, %v84, %v87
    %v106 = vsel %vm100, %v93, 920167782
    %v107 = vsel %vm99, %v90, %v106
    %v108 = vsel %vm98, %v105, %v107
    %v109 = vsel %vm97, %v87, %v90
    %v110 = vsel %vm100, %v96, 1326507024
    %v111 = vsel %vm99, %v93, %v110
    %v112 = vsel %vm98, %v109, %v111
    %v113 = vshll.u32 %v73, 8
    %v114 = vmul.u32.u64.compose %v113, %v112
    %v115 = vextract.low.u32 %v114
    %v116 = vextract.high.u32 %v114
    %v117 = vmul.u32.u64.compose %v113, %v108
    %v118 = vextract.low.u32 %v117
    %v119 = vextract.high.u32 %v117
    %v120 = vmul.u32 %v113, %v104
    %v121 = vadd.s32 %v116, %v118
    %vm122 = vc.u32 %v116, %v118
    %v123 = vadd.s32 %v119, 1
    %v124 = vsel %vm122, %v123, %v119
    %v125 = vadd.s32 %v120, %v124
    %v126 = vadd.s32 %v125, 536870912
    %v127 = vshrl.u32 %v126, 30
    %v128 = vshll.u32 %v127, 30
    %v129 = vsub.s32 %v125, %v128
    %vm130 = vcmp.lt.s32.totalorder %v129, 0
    %v131 = vsub.s32 0, %v129
    %v132 = vsel %vm130, %v131, %v129
    %v133 = vclz %v132
    %v134 = vsub.s32 %v133, 2
    %vm135 = vcmp.gt.s32.totalorder 0, %v134
    %v136 = vsel %vm135, 0, %v134
    %v137 = vsub.s32 32, %v136
    %v138 = vshll.u32 %v129, %v136
    %v139 = vshrl.u32 %v121, %v137
    %v140 = vor.u32 %v138, %v139
    %v141 = vsub.s32 4294967266, %v136
    %v142 = vadd.s32 %v141, 127
    %v143 = vshll.u32 %v142, 23
    %v144 = vor.u32 4788187, %v143
    %v145 = vand.u32 2147483647, %v144
    %v147 = vcvt.s32.f32 %v140
    %v148 = vmul.f32 %v147, %v145
    %v149 = vxor.u32 %v148, 2147483648
    %v150 = vsel %vm67, %v149, %v148
    %v151 = vsub.s32 4, %v127
    %v152 = vsel %vm67, %v151, %v127
    %v153 = vsel %vm66, %v64, %v150
    %v154 = vsel %vm66, 0, %v152
    %v155 = vcosq.f32.pop %v153
    %v156 = vsinq.f32.pop %v153
    %vm157 = vweird.f32 %v64
    %v158 = vadd.s32 %v154, 3
    %v159 = vand.u32 %v158, 3
    %vm160 = vcmp.lt.s32.totalorder %v159, 2
    %vm161 = vcmp.eq.s32.totalorder %v159, 0
    %v162 = vxor.u32 %v156, 2147483648
    %v163 = vsel %vm161, %v155, %v162
    %vm164 = vcmp.eq.s32.totalorder %v159, 2
    %v165 = vxor.u32 %v155, 2147483648
    %v166 = vsel %vm164, %v165, %v156
    %v167 = vsel %vm160, %v163, %v166
    %v168 = vsel %vm157, nan, %v167
    %v169 = vand.u32 2147483647, %v64
    %vm170 = vcmp.le.f32.partialorder %v169, 0.7853982
    %vm171 = vcmp.lt.s32.totalorder %v64, 0
    %v172 = vand.u32 %v64, 2139095040
    %v173 = vshrl.u32 %v172, 23
    %v174 = vsub.s32 %v173, 127
    %v175 = vand.u32 2147483647, %v64
    %v176 = vand.u32 %v175, 8388607
    %v177 = vor.u32 %v176, 8388608
    %v178 = vsub.s32 0, %v177
    %v179 = vadd.s32 %v174, 1
    %vm180 = vcmp.gt.s32.totalorder %v179, 0
    %v181 = vsel %vm180, %v179, 0
    %v182 = vshrl.u32 %v181, 5
    %v183 = vand.u32 %v181, 31
    %v184 = vsub.s32 32, %v183
    %v185 = vshrl.u32 683565275, %v184
    %v186 = vshll.u32 683565275, %v183
    %v187 = vshrl.u32 2475754826, %v184
    %v188 = vor.u32 %v186, %v187
    %v189 = vshll.u32 2475754826, %v183
    %v190 = vshrl.u32 2131351028, %v184
    %v191 = vor.u32 %v189, %v190
    %v192 = vshll.u32 2131351028, %v183
    %v193 = vshrl.u32 2102212464, %v184
    %v194 = vor.u32 %v192, %v193
    %v195 = vshll.u32 2102212464, %v183
    %v196 = vshrl.u32 920167782, %v184
    %v197 = vor.u32 %v195, %v196
    %v198 = vshll.u32 920167782, %v183
    %v199 = vshrl.u32 1326507024, %v184
    %v200 = vor.u32 %v198, %v199
    %vm201 = vcmp.lt.s32.totalorder %v182, 1
    %vm202 = vcmp.lt.s32.totalorder %v182, 2
    %vm203 = vcmp.lt.s32.totalorder %v182, 3
    %vm204 = vcmp.lt.s32.totalorder %v182, 4
    %v205 = vsel %vm201, %v185, %v188
    %v206 = vsel %vm204, %v194, 2102212464
    %v207 = vsel %vm203, %v191, %v206
    %v208 = vsel %vm202, %v205, %v207
    %v209 = vsel %vm201, %v188, %v191
    %v210 = vsel %vm204, %v197, 920167782
    %v211 = vsel %vm203, %v194, %v210
    %v212 = vsel %vm202, %v209, %v211
    %v213 = vsel %vm201, %v191, %v194
    %v214 = vsel %vm204, %v200, 1326507024
    %v215 = vsel %vm203, %v197, %v214
    %v216 = vsel %vm202, %v213, %v215
    %v217 = vshll.u32 %v177, 8
    %v218 = vmul.u32.u64.compose %v217, %v216
    %v219 = vextract.low.u32 %v218
    %v220 = vextract.high.u32 %v218
    %v221 = vmul.u32.u64.compose %v217, %v212
    %v222 = vextract.low.u32 %v221
    %v223 = vextract.high.u32 %v221
    %v224 = vmul.u32 %v217, %v208
    %v225 = vadd.s32 %v220, %v222
    %vm226 = vc.u32 %v220, %v222
    %v227 = vadd.s32 %v223, 1
    %v228 = vsel %vm226, %v227, %v223
    %v229 = vadd.s32 %v224, %v228
    %v230 = vadd.s32 %v229, 536870912
    %v231 = vshrl.u32 %v230, 30
    %v232 = vshll.u32 %v231, 30
    %v233 = vsub.s32 %v229, %v232
    %vm234 = vcmp.lt.s32.totalorder %v233, 0
    %v235 = vsub.s32 0, %v233
    %v236 = vsel %vm234, %v235, %v233
    %v237 = vclz %v236
    %v238 = vsub.s32 %v237, 2
    %vm239 = vcmp.gt.s32.totalorder 0, %v238
    %v240 = vsel %vm239, 0, %v238
    %v241 = vsub.s32 32, %v240
    %v242 = vshll.u32 %v233, %v240
    %v243 = vshrl.u32 %v225, %v241
    %v244 = vor.u32 %v242, %v243
    %v245 = vsub.s32 4294967266, %v240
    %v246 = vadd.s32 %v245, 127
    %v247 = vshll.u32 %v246, 23
    %v248 = vor.u32 4788187, %v247
    %v249 = vand.u32 2147483647, %v248
    %v251 = vcvt.s32.f32 %v244
    %v252 = vmul.f32 %v251, %v249
    %v253 = vxor.u32 %v252, 2147483648
    %v254 = vsel %vm171, %v253, %v252
    %v255 = vsub.s32 4, %v231
    %v256 = vsel %vm171, %v255, %v231
    %v257 = vsel %vm170, %v64, %v254
    %v258 = vsel %vm170, 0, %v256
    %v259 = vcosq.f32.pop %v257
    %v260 = vsinq.f32.pop %v257
    %vm261 = vweird.f32 %v64
    %v262 = vand.u32 %v258, 3
    %vm263 = vcmp.lt.s32.totalorder %v262, 2
    %vm264 = vcmp.eq.s32.totalorder %v262, 0
    %v265 = vxor.u32 %v260, 2147483648
    %v266 = vsel %vm264, %v259, %v265
    %vm267 = vcmp.eq.s32.totalorder %v262, 2
    %v268 = vxor.u32 %v259, 2147483648
    %v269 = vsel %vm267, %v268, %v260
    %v270 = vsel %vm263, %v266, %v269
    %v271 = vsel %vm261, nan, %v270
    %v272 = vsel %vm52, %v168, %v271
    %v273 = vld [vmem:[#allocation2] sm:$0xff]
    %v274 = vld [vmem:[#allocation2 + $0x8] sm:$0xff]
    %v275 = vld [vmem:[#allocation2 + $0x10] sm:$0xff]
    %v276 = vld [vmem:[#allocation2 + $0x18] sm:$0xff]
    %v277 = vld [vmem:[%s2] sm:$0x1]
    %v279 = vlaneseq
    %v280 = vshrl.u32 %v279, 7
    %v281 = vsub.s32 0, %v280
    %v282 = vrot.slane %v277, %v281
    %vm284 = vcmask 261120
    %v286 = vsel %vm284, %v272, 0
    %288 = vmatprep.subr.mxu0 0.0
    %289 = vmatpush1.msra.mxu0 0.0
    %290 = vmatprep.subr.mxu0 0.0
    %291 = vmatpush1.msra.mxu0 0.0
    %292 = vmatprep.subr.mxu0 0.0
    %293 = vmatpush1.msra.mxu0 0.0
    %294 = vmatprep.subr.mxu0 0.0
    %295 = vmatpush1.msra.mxu0 0.0
    %296 = vmatprep.subr.mxu0 0.0
    %297 = vmatpush1.msra.mxu0 0.0
    %298 = vmatprep.subr.mxu0 0.0
    %299 = vmatpush1.msra.mxu0 0.0
    %300 = vmatprep.subr.mxu0 0.0
    %301 = vmatpush1.msra.mxu0 0.0
    %302 = vmatprep.subr.mxu0 0.0
    %303 = vmatpush1.msra.mxu0 0.0
    %304 = vmatprep.subr.mxu0 0.0
    %305 = vmatpush1.msra.mxu0 0.0
    %306 = vmatprep.subr.mxu0 0.0
    %307 = vmatpush1.msra.mxu0 0.0
    %308 = vmatprep.subr.mxu0 0.0
    %309 = vmatpush1.msra.mxu0 0.0
    %310 = vmatprep.subr.mxu0 0.0
    %311 = vmatpush1.msra.mxu0 0.0
    %312 = vmatprep.subr.mxu0 0.0
    %313 = vmatpush1.msra.mxu0 %v276
    %314 = vmatprep.subr.mxu0 0.0
    %315 = vmatpush1.msra.mxu0 %v275
    %316 = vmatprep.subr.mxu0 0.0
    %317 = vmatpush1.msra.mxu0 %v274
    %318 = vmatprep.subr.mxu0 0.0
    %319 = vmatpush1.msra.mxu0 %v273
    %320 = vmatprep.subr.mxu0 0.0
    %321 = vmatpush2.msra.mxu0 0.0
    %322 = vmatprep.subr.mxu0 0.0
    %323 = vmatpush2.msra.mxu0 0.0
    %324 = vmatprep.subr.mxu0 0.0
    %325 = vmatpush2.msra.mxu0 0.0
    %326 = vmatprep.subr.mxu0 0.0
    %327 = vmatpush2.msra.mxu0 0.0
    %328 = vmatprep.subr.mxu0 0.0
    %329 = vmatpush2.msra.mxu0 0.0
    %330 = vmatprep.subr.mxu0 0.0
    %331 = vmatpush2.msra.mxu0 0.0
    %332 = vmatprep.subr.mxu0 0.0
    %333 = vmatpush2.msra.mxu0 0.0
    %334 = vmatprep.subr.mxu0 0.0
    %335 = vmatpush2.msra.mxu0 0.0
    %336 = vmatprep.subr.mxu0 0.0
    %337 = vmatpush2.msra.mxu0 0.0
    %338 = vmatprep.subr.mxu0 0.0
    %339 = vmatpush2.msra.mxu0 0.0
    %340 = vmatprep.subr.mxu0 0.0
    %341 = vmatpush2.msra.mxu0 0.0
    %342 = vmatprep.subr.mxu0 0.0
    %343 = vmatpush2.msra.mxu0 0.0
    %344 = vmatprep.subr.mxu0 0.0
    %345 = vmatpush2.msra.mxu0 0.0
    %346 = vmatprep.subr.mxu0 0.0
    %347 = vmatpush2.msra.mxu0 0.0
    %348 = vmatprep.subr.mxu0 0.0
    %349 = vmatpush2.msra.mxu0 0.0
    %350 = vmatprep.subr.mxu0 0.0
    %351 = vmatpush2.msra.mxu0 0.0
    %352 = vmatprep.mubr.f32.mxu0 0.0
    %353 = vmatmul.mubr.f32.gmra.mxu0 %v286
    %v354 = vpop.f32.mrf.mxu0
    %v355 = vadd.f32 %v282, %v354
    %v356 = vpop.f32.mrf.mxu0
    %357 = vdwg.mxu0
    %v358 = vxor.u32 %v355, 2147483648
    %v359 = vmul.f32 %v358, 1.442695
    %v360 = vpow.pop %v359
    %v361 = vadd.f32 %v360, 1.0
    %v362 = vrcp.pop %v361
    %v363 = vmul.f32 1.0, %v362
    %v364 = vmul.f32 %v355, %v363
    %v365 = vld [vmem:[#allocation5] sm:$0xff]
    %v366 = vld [vmem:[#allocation5 + $0x8] sm:$0xff]
    %v367 = vld [vmem:[#allocation5 + $0x10] sm:$0xff]
    %v368 = vld [vmem:[#allocation5 + $0x18] sm:$0xff]
    %v369 = vld [vmem:[#allocation5 + $0x20] sm:$0xff]
    %v370 = vld [vmem:[#allocation5 + $0x28] sm:$0xff]
    %v371 = vld [vmem:[#allocation5 + $0x30] sm:$0xff]
    %v372 = vld [vmem:[#allocation5 + $0x38] sm:$0xff]
    %v373 = vld [vmem:[#allocation5 + $0x40] sm:$0xff]
    %v374 = vld [vmem:[#allocation5 + $0x48] sm:$0xff]
    %v375 = vld [vmem:[#allocation5 + $0x50] sm:$0xff]
    %v376 = vld [vmem:[#allocation5 + $0x58] sm:$0xff]
    %v377 = vld [vmem:[#allocation5 + $0x60] sm:$0xff]
    %v378 = vld [vmem:[#allocation5 + $0x68] sm:$0xff]
    %v379 = vld [vmem:[#allocation5 + $0x70] sm:$0xff]
    %v380 = vld [vmem:[#allocation5 + $0x78] sm:$0xff]
    %v381 = vld [vmem:[%s4] sm:$0x1]
    %v383 = vlaneseq
    %v384 = vshrl.u32 %v383, 7
    %v385 = vsub.s32 0, %v384
    %v386 = vrot.slane %v381, %v385
    %388 = vmatprep.subr.mxu0 0.0
    %389 = vmatpush1.msra.mxu0 %v380
    %390 = vmatprep.subr.mxu0 0.0
    %391 = vmatpush1.msra.mxu0 %v379
    %392 = vmatprep.subr.mxu0 0.0
    %393 = vmatpush1.msra.mxu0 %v378
    %394 = vmatprep.subr.mxu0 0.0
    %395 = vmatpush1.msra.mxu0 %v377
    %396 = vmatprep.subr.mxu0 0.0
    %397 = vmatpush1.msra.mxu0 %v376
    %398 = vmatprep.subr.mxu0 0.0
    %399 = vmatpush1.msra.mxu0 %v375
    %400 = vmatprep.subr.mxu0 0.0
    %401 = vmatpush1.msra.mxu0 %v374
    %402 = vmatprep.subr.mxu0 0.0
    %403 = vmatpush1.msra.mxu0 %v373
    %404 = vmatprep.subr.mxu0 0.0
    %405 = vmatpush1.msra.mxu0 %v372
    %406 = vmatprep.subr.mxu0 0.0
    %407 = vmatpush1.msra.mxu0 %v371
    %408 = vmatprep.subr.mxu0 0.0
    %409 = vmatpush1.msra.mxu0 %v370
    %410 = vmatprep.subr.mxu0 0.0
    %411 = vmatpush1.msra.mxu0 %v369
    %412 = vmatprep.subr.mxu0 0.0
    %413 = vmatpush1.msra.mxu0 %v368
    %414 = vmatprep.subr.mxu0 0.0
    %415 = vmatpush1.msra.mxu0 %v367
    %416 = vmatprep.subr.mxu0 0.0
    %417 = vmatpush1.msra.mxu0 %v366
    %418 = vmatprep.subr.mxu0 0.0
    %419 = vmatpush1.msra.mxu0 %v365
    %420 = vmatprep.subr.mxu0 0.0
    %421 = vmatpush2.msra.mxu0 0.0
    %422 = vmatprep.subr.mxu0 0.0
    %423 = vmatpush2.msra.mxu0 0.0
    %424 = vmatprep.subr.mxu0 0.0
    %425 = vmatpush2.msra.mxu0 0.0
    %426 = vmatprep.subr.mxu0 0.0
    %427 = vmatpush2.msra.mxu0 0.0
    %428 = vmatprep.subr.mxu0 0.0
    %429 = vmatpush2.msra.mxu0 0.0
    %430 = vmatprep.subr.mxu0 0.0
    %431 = vmatpush2.msra.mxu0 0.0
    %432 = vmatprep.subr.mxu0 0.0
    %433 = vmatpush2.msra.mxu0 0.0
    %434 = vmatprep.subr.mxu0 0.0
    %435 = vmatpush2.msra.mxu0 0.0
    %436 = vmatprep.subr.mxu0 0.0
    %437 = vmatpush2.msra.mxu0 0.0
    %438 = vmatprep.subr.mxu0 0.0
    %439 = vmatpush2.msra.mxu0 0.0
    %440 = vmatprep.subr.mxu0 0.0
    %441 = vmatpush2.msra.mxu0 0.0
    %442 = vmatprep.subr.mxu0 0.0
    %443 = vmatpush2.msra.mxu0 0.0
    %444 = vmatprep.subr.mxu0 0.0
    %445 = vmatpush2.msra.mxu0 0.0
    %446 = vmatprep.subr.mxu0 0.0
    %447 = vmatpush2.msra.mxu0 0.0
    %448 = vmatprep.subr.mxu0 0.0
    %449 = vmatpush2.msra.mxu0 0.0
    %450 = vmatprep.subr.mxu0 0.0
    %451 = vmatpush2.msra.mxu0 0.0
    %452 = vmatprep.mubr.f32.mxu0 0.0
    %453 = vmatmul.mubr.f32.gmra.mxu0 %v364
    %v454 = vpop.f32.mrf.mxu0
    %v455 = vadd.f32 %v386, %v454
    %v456 = vpop.f32.mrf.mxu0
    %457 = vdwg.mxu0
    %458 = vst [vmem:[#allocation7] sm:$0xff] %v455
    // Predicated region
    $region30: #{tpu_custom_call.1} parent=1 // pred_check
      _
    $region31: #{tpu_custom_call.1} parent=1 // pred_check_branch
      %460 = sbr.rel (0) target = $region33
    $region32: #{tpu_custom_call.1} parent=1 // pred_region
      %s462 = ssub.s32 128, 128
      %463 = vsyncadd [#allocation4], %s462
      %s465 = sshll.u32 [#allocation7], 4
      %s466 = int_to_ptr.vmem [resolvable:$true] %s465
      %468 = dma.vmem_to_hbm [thread:$0]  %s466, 128, %s5, [#allocation4]
    $region33: #{tpu_custom_call.1} parent=1 // pred_fallthru
      _
    // Predicated region
    $region34: #{tpu_custom_call.1} parent=1 // pred_check
      _
    $region35: #{tpu_custom_call.1} parent=1 // pred_check_branch
      %470 = sbr.rel (0) target = $region37
    $region36: #{tpu_custom_call.1} parent=1 // pred_region
      %471 = dma.done [#allocation4], 128
    $region37: #{tpu_custom_call.1} parent=1 // pred_fallthru
      _
    %472 = vsyncpa [#allocation3], 1
    %473 = vsyncpa [#allocation6], 1
    %474 = vsyncpa [#allocation4], 1

</llo_original>
